<compile_context>
chip_gen: v5e
topology: v5e:2x2
jax: 0.10.0
libtpu: 0.0.40
codegen_flags: <defaults>
</compile_context>

<pallas_src>
import jax
import jax.numpy as jnp
from jax.experimental import pallas as pl
from jax.experimental.pallas import tpu as pltpu

HIDDEN = 128


def _round_up(v, m):
    return (v + m - 1) // m * m


def _vmem_budget_bytes():
    """Per-generation VMEM budget (75% of physical, headroom for Mosaic scratch)."""
    try:
        cap = pltpu.get_tpu_info().vmem_capacity_bytes
    except Exception:
        cap = 64 * 1024 * 1024  # conservative default that fits v7x (64 MiB/TC)
    return int(cap * 3 // 4)


def _choose_tile_b(B, F, A, budget_bytes):
    """Batch-tile size: multiple of 8, VMEM-bounded, balanced across grid steps,
    and >=2 steps when B >= 16 so v7x megacore can shard the batch axis."""
    if B <= 8:
        return B
    # Per-row VMEM: double-buffered f32 x tile + two double-buffered f32 output tiles.
    per_row = 2 * F * 4 + 2 * 2 * A * 4
    # Resident weights/biases (count double-buffered to stay safe under fallback).
    weight_bytes = 2 * (F * HIDDEN * 2 + HIDDEN * A * 2 + (HIDDEN + A) * 4)
    avail = max(budget_bytes - weight_bytes, per_row * 8)
    cap = max(8, min(1024, (avail // per_row) // 8 * 8))
    nb = pl.cdiv(B, cap)
    if B >= 16:
        nb = max(nb, 2)            # >=2 grid steps -> both v7x TensorCores busy
    if nb == 1:
        return B                   # single block == full batch dim (always legal)
    return _round_up(pl.cdiv(B, nb), 8)


def aux_head_kernel(x_ref, w1_ref, b1_ref, w2_ref, b2_ref, xaux_ref, paux_ref):
    # x: (TILE_B, F) f32/bf16 -> bf16 MXU operands, f32 accumulation.
    x = x_ref[...].astype(jnp.bfloat16)
    h = jnp.dot(x, w1_ref[...], preferred_element_type=jnp.float32)      # MXU
    h = jnp.maximum(h + b1_ref[...], 0.0)                                # bias + ReLU (f32)
    logits = jnp.dot(h.astype(jnp.bfloat16), w2_ref[...],
                     preferred_element_type=jnp.float32) + b2_ref[...]   # MXU
    xaux_ref[...] = logits

    # Numerically-stable softmax over the real num_aux axis. Exact division:
    # the kernel is HBM-bound, so the VPU divide is free and rows sum to 1.
    m = jnp.max(logits, axis=-1, keepdims=True)
    e = jnp.exp(logits - m)
    paux_ref[...] = e / jnp.sum(e, axis=-1, keepdims=True)


def prepare_params(w1, b1, w2, b2):
    """One-time parameter prep (hoisted out of the per-call path):
    bf16 MXU weights, f32 row-vector biases. nn.Linear weights stored transposed (in, out)."""
    return (w1.astype(jnp.bfloat16),
            b1.reshape(1, -1).astype(jnp.float32),
            w2.astype(jnp.bfloat16),
            b2.reshape(1, -1).astype(jnp.float32))


def _weight_specs(F, H, A, single_buffer):
    kw = {"pipeline_mode": pl.Buffered(1)} if single_buffer else {}
    return [
        pl.BlockSpec((F, H), lambda i: (0, 0), **kw),   # w1: resident
        pl.BlockSpec((1, H), lambda i: (0, 0), **kw),   # b1
        pl.BlockSpec((H, A), lambda i: (0, 0), **kw),   # w2
        pl.BlockSpec((1, A), lambda i: (0, 0), **kw),   # b2
    ]


def auxiliary_head2(x, params):
    """x: (B, in_features) f32 or bf16. params = prepare_params(w1, b1, w2, b2).

    Returns (x_aux, px_aux): logits and softmax(dim=1), each (B, num_aux) f32.
    """
    w1, b1, w2, b2 = params
    B, F = x.shape
    H = w1.shape[1]
    A = w2.shape[1]
    assert H == HIDDEN and w1.shape[0] == F
    assert b1.shape == (1, H) and w2.shape == (H, A) and b2.shape == (1, A)

    budget = _vmem_budget_bytes()
    tile_b = _choose_tile_b(B, F, A, budget)
    nb = pl.cdiv(B, tile_b)

    cost = pl.CostEstimate(
        flops=2 * B * F * H + 2 * B * H * A,
        transcendentals=B * A,
        bytes_accessed=(B * F * x.dtype.itemsize + F * H * 2 + H * A * 2
                        + (H + A) * 4 + 2 * B * A * 4),
    )

    def build(single_buffer):
        grid_spec = pltpu.PrefetchScalarGridSpec(
            num_scalar_prefetch=0,
            grid=(nb,),
            in_specs=[pl.BlockSpec((tile_b, F), lambda i: (i, 0))]   # x streamed per tile
                     + _weight_specs(F, H, A, single_buffer),
            out_specs=(
                pl.BlockSpec((tile_b, A), lambda i: (i, 0)),
                pl.BlockSpec((tile_b, A), lambda i: (i, 0)),
            ),
        )
        return pl.pallas_call(
            aux_head_kernel,
            out_shape=(
                jax.ShapeDtypeStruct((B, A), jnp.float32),
                jax.ShapeDtypeStruct((B, A), jnp.float32),
            ),
            grid_spec=grid_spec,
            compiler_params=pltpu.CompilerParams(
                dimension_semantics=("parallel",),   # megacore sharding on v7x
                vmem_limit_bytes=budget,
            ),
            cost_estimate=cost,
        )

    try:
        # Resident weights need only one buffer (constant index_map).
        return build(True)(x, w1, b1, w2, b2)
    except Exception:
        # pipeline_mode=pl.Buffered(1) unsupported on this jax/libtpu: default buffering.
        return build(False)(x, w1, b1, w2, b2)


def init_params(key, in_features, num_aux, hidden=HIDDEN):
    """Deterministic synthetic init (nn.Linear weights stored transposed: (in, out))."""
    k1, k2, k3, k4 = jax.random.split(key, 4)
    w1 = jax.random.normal(k1, (in_features, hidden), jnp.float32) * 0.05
    b1 = jax.random.normal(k2, (hidden,), jnp.float32) * 0.05
    w2 = jax.random.normal(k3, (hidden, num_aux), jnp.float32) * 0.05
    b2 = jax.random.normal(k4, (num_aux,), jnp.float32) * 0.05
    return w1, b1, w2, b2


if __name__ == "__main__":
    B, in_features, num_aux = 8, 32, 8

    key = jax.random.PRNGKey(0)
    kx, kp = jax.random.split(key)
    x = jax.random.normal(kx, (B, in_features), jnp.float32)
    w1, b1, w2, b2 = init_params(kp, in_features, num_aux)
    params = prepare_params(w1, b1, w2, b2)   # one-time prep, outside the per-call path

    x_aux, px_aux = auxiliary_head2(x, params)
    jax.block_until_ready((x_aux, px_aux))

    # Reference with matching bf16-operand / f32-accumulate precision.
    xb, w1b, w2b = (t.astype(jnp.bfloat16) for t in (x, w1, w2))
    h_ref = jnp.maximum(
        jnp.dot(xb, w1b, preferred_element_type=jnp.float32) + b1.reshape(1, -1), 0.0)
    logits_ref = jnp.dot(h_ref.astype(jnp.bfloat16), w2b,
                         preferred_element_type=jnp.float32) + b2.reshape(1, -1)
    p_ref = jax.nn.softmax(logits_ref, axis=1)

    assert x_aux.shape == (B, num_aux) and px_aux.shape == (B, num_aux)
    assert jnp.allclose(x_aux, logits_ref, atol=1e-3, rtol=1e-3)
    assert jnp.allclose(px_aux, p_ref, atol=2e-3, rtol=2e-3)
    assert jnp.allclose(jnp.sum(px_aux, axis=1), 1.0, atol=1e-5)   # exact division now

    print("KERNEL_OK")
</pallas_src>

<mosaic_0001>
module attributes {stable_mosaic.version = 11 : i64} {
  func.func @aux_head_kernel(%arg0: i32, %arg1: memref<8x32xf32, #tpu.memory_space<vmem>>, %arg2: memref<32x128xbf16, #tpu.memory_space<vmem>>, %arg3: memref<1x128xf32, #tpu.memory_space<vmem>>, %arg4: memref<128x8xbf16, #tpu.memory_space<vmem>>, %arg5: memref<1x8xf32, #tpu.memory_space<vmem>>, %arg6: memref<8x8xf32, #tpu.memory_space<vmem>>, %arg7: memref<8x8xf32, #tpu.memory_space<vmem>>) attributes {dimension_semantics = [#tpu.dimension_semantics<parallel>], iteration_bounds = array<i64: 1>, scalar_prefetch = 0 : i64, scratch_operands = 0 : i64, tpu.core_type = #tpu.core_type<tc>, window_params = [{transform_indices = @transform_0, window_bounds = array<i64: 8, 32>}, {pipeline_mode = #tpu.pipeline_mode<synchronous>, transform_indices = @transform_1, window_bounds = array<i64: 32, 128>}, {pipeline_mode = #tpu.pipeline_mode<synchronous>, transform_indices = @transform_2, window_bounds = array<i64: 1, 128>}, {pipeline_mode = #tpu.pipeline_mode<synchronous>, transform_indices = @transform_3, window_bounds = array<i64: 128, 8>}, {pipeline_mode = #tpu.pipeline_mode<synchronous>, transform_indices = @transform_4, window_bounds = array<i64: 1, 8>}, {transform_indices = @transform_5, window_bounds = array<i64: 8, 8>}, {transform_indices = @transform_6, window_bounds = array<i64: 8, 8>}]} {
    %c0 = arith.constant 0 : index
    %c0_0 = arith.constant 0 : index
    %0 = vector.load %arg1[%c0, %c0_0] : memref<8x32xf32, #tpu.memory_space<vmem>>, vector<8x32xf32>
    %1 = arith.truncf %0 : vector<8x32xf32> to vector<8x32xbf16>
    %c0_1 = arith.constant 0 : index
    %c0_2 = arith.constant 0 : index
    %2 = vector.load %arg2[%c0_1, %c0_2] : memref<32x128xbf16, #tpu.memory_space<vmem>>, vector<32x128xbf16>
    %cst = arith.constant dense<0.000000e+00> : vector<8x128xf32>
    %3 = tpu.matmul %1, %2, %cst {dimension_numbers = #tpu.dot_dimension_numbers<[1], [0], [0], [1], [0, 0, 1, 1], [], []>} : vector<8x32xbf16>, vector<32x128xbf16>, vector<8x128xf32> -> vector<8x128xf32>
    %c0_3 = arith.constant 0 : index
    %c0_4 = arith.constant 0 : index
    %4 = vector.load %arg3[%c0_3, %c0_4] : memref<1x128xf32, #tpu.memory_space<vmem>>, vector<1x128xf32>
    %5 = vector.broadcast %4 : vector<1x128xf32> to vector<8x128xf32>
    %6 = arith.addf %3, %5 : vector<8x128xf32>
    %cst_5 = arith.constant 0.000000e+00 : f32
    %7 = vector.broadcast %cst_5 : f32 to vector<8x128xf32>
    %8 = arith.maximumf %6, %7 : vector<8x128xf32>
    %9 = arith.truncf %8 : vector<8x128xf32> to vector<8x128xbf16>
    %c0_6 = arith.constant 0 : index
    %c0_7 = arith.constant 0 : index
    %10 = vector.load %arg4[%c0_6, %c0_7] : memref<128x8xbf16, #tpu.memory_space<vmem>>, vector<128x8xbf16>
    %cst_8 = arith.constant dense<0.000000e+00> : vector<8x8xf32>
    %11 = tpu.matmul %9, %10, %cst_8 {dimension_numbers = #tpu.dot_dimension_numbers<[1], [0], [0], [1], [0, 0, 1, 1], [], []>} : vector<8x128xbf16>, vector<128x8xbf16>, vector<8x8xf32> -> vector<8x8xf32>
    %c0_9 = arith.constant 0 : index
    %c0_10 = arith.constant 0 : index
    %12 = vector.load %arg5[%c0_9, %c0_10] : memref<1x8xf32, #tpu.memory_space<vmem>>, vector<1x8xf32>
    %13 = vector.broadcast %12 : vector<1x8xf32> to vector<8x8xf32>
    %14 = arith.addf %11, %13 : vector<8x8xf32>
    %c0_11 = arith.constant 0 : index
    %c0_12 = arith.constant 0 : index
    %15 = vector.load %arg6[%c0_11, %c0_12] : memref<8x8xf32, #tpu.memory_space<vmem>>, vector<8x8xf32>
    tpu.vector_store %arg6[%c0_11, %c0_12], %14 {strides = array<i32>} : memref<8x8xf32, #tpu.memory_space<vmem>>, vector<8x8xf32>,
    %cst_13 = arith.constant dense<0xFF800000> : vector<8xf32>
    %16 = vector.multi_reduction <maximumf>, %14, %cst_13 [1] : vector<8x8xf32> to vector<8xf32>
    %17 = vector.shape_cast %16 : vector<8xf32> to vector<8x1xf32>
    %18 = vector.broadcast %17 : vector<8x1xf32> to vector<8x8xf32>
    %19 = arith.subf %14, %18 : vector<8x8xf32>
    %20 = math.exp %19 : vector<8x8xf32>
    %cst_14 = arith.constant dense<0.000000e+00> : vector<8xf32>
    %21 = vector.multi_reduction <add>, %20, %cst_14 [1] : vector<8x8xf32> to vector<8xf32>
    %22 = vector.shape_cast %21 : vector<8xf32> to vector<8x1xf32>
    %23 = vector.broadcast %22 : vector<8x1xf32> to vector<8x8xf32>
    %24 = arith.divf %20, %23 : vector<8x8xf32>
    %c0_15 = arith.constant 0 : index
    %c0_16 = arith.constant 0 : index
    %25 = vector.load %arg7[%c0_15, %c0_16] : memref<8x8xf32, #tpu.memory_space<vmem>>, vector<8x8xf32>
    tpu.vector_store %arg7[%c0_15, %c0_16], %24 {strides = array<i32>} : memref<8x8xf32, #tpu.memory_space<vmem>>, vector<8x8xf32>,
    return
  }
  func.func @transform_0(%arg0: i32) -> (i32, i32) {
    %c0_i32 = arith.constant 0 : i32
    %c0_i32_0 = arith.constant 0 : i32
    return %arg0, %c0_i32 : i32, i32
  }
  func.func @transform_1(%arg0: i32) -> (i32, i32) {
    %c0_i32 = arith.constant 0 : i32
    %c0_i32_0 = arith.constant 0 : i32
    %c0_i32_1 = arith.constant 0 : i32
    return %c0_i32, %c0_i32_0 : i32, i32
  }
  func.func @transform_2(%arg0: i32) -> (i32, i32) {
    %c0_i32 = arith.constant 0 : i32
    %c0_i32_0 = arith.constant 0 : i32
    %c0_i32_1 = arith.constant 0 : i32
    return %c0_i32, %c0_i32_0 : i32, i32
  }
  func.func @transform_3(%arg0: i32) -> (i32, i32) {
    %c0_i32 = arith.constant 0 : i32
    %c0_i32_0 = arith.constant 0 : i32
    %c0_i32_1 = arith.constant 0 : i32
    return %c0_i32, %c0_i32_0 : i32, i32
  }
  func.func @transform_4(%arg0: i32) -> (i32, i32) {
    %c0_i32 = arith.constant 0 : i32
    %c0_i32_0 = arith.constant 0 : i32
    %c0_i32_1 = arith.constant 0 : i32
    return %c0_i32, %c0_i32_0 : i32, i32
  }
  func.func @transform_5(%arg0: i32) -> (i32, i32) {
    %c0_i32 = arith.constant 0 : i32
    %c0_i32_0 = arith.constant 0 : i32
    return %arg0, %c0_i32 : i32, i32
  }
  func.func @transform_6(%arg0: i32) -> (i32, i32) {
    %c0_i32 = arith.constant 0 : i32
    %c0_i32_0 = arith.constant 0 : i32
    return %arg0, %c0_i32 : i32, i32
  }
}

module attributes {stable_mosaic.version = 11 : i64} {
  func.func @aux_head_kernel(%arg0: i32, %arg1: memref<8x32xf32, #tpu.memory_space<vmem>>, %arg2: memref<32x128xbf16, #tpu.memory_space<vmem>>, %arg3: memref<1x128xf32, #tpu.memory_space<vmem>>, %arg4: memref<128x8xbf16, #tpu.memory_space<vmem>>, %arg5: memref<1x8xf32, #tpu.memory_space<vmem>>, %arg6: memref<8x8xf32, #tpu.memory_space<vmem>>, %arg7: memref<8x8xf32, #tpu.memory_space<vmem>>) attributes {dimension_semantics = [#tpu.dimension_semantics<parallel>], iteration_bounds = array<i64: 1>, scalar_prefetch = 0 : i64, scratch_operands = 0 : i64, tpu.core_type = #tpu.core_type<tc>, window_params = [{transform_indices = @transform_0, window_bounds = array<i64: 8, 32>}, {pipeline_mode = #tpu.pipeline_mode<synchronous>, transform_indices = @transform_1, window_bounds = array<i64: 32, 128>}, {pipeline_mode = #tpu.pipeline_mode<synchronous>, transform_indices = @transform_2, window_bounds = array<i64: 1, 128>}, {pipeline_mode = #tpu.pipeline_mode<synchronous>, transform_indices = @transform_3, window_bounds = array<i64: 128, 8>}, {pipeline_mode = #tpu.pipeline_mode<synchronous>, transform_indices = @transform_4, window_bounds = array<i64: 1, 8>}, {transform_indices = @transform_5, window_bounds = array<i64: 8, 8>}, {transform_indices = @transform_6, window_bounds = array<i64: 8, 8>}]} {
    %c0 = arith.constant 0 : index
    %c0_0 = arith.constant 0 : index
    %0 = vector.load %arg1[%c0, %c0_0] : memref<8x32xf32, #tpu.memory_space<vmem>>, vector<8x32xf32>
    %1 = arith.truncf %0 : vector<8x32xf32> to vector<8x32xbf16>
    %c0_1 = arith.constant 0 : index
    %c0_2 = arith.constant 0 : index
    %2 = vector.load %arg2[%c0_1, %c0_2] : memref<32x128xbf16, #tpu.memory_space<vmem>>, vector<32x128xbf16>
    %cst = arith.constant dense<0.000000e+00> : vector<8x128xf32>
    %3 = tpu.matmul %1, %2, %cst {dimension_numbers = #tpu.dot_dimension_numbers<[1], [0], [0], [1], [0, 0, 1, 1], [], []>} : vector<8x32xbf16>, vector<32x128xbf16>, vector<8x128xf32> -> vector<8x128xf32>
    %c0_3 = arith.constant 0 : index
    %c0_4 = arith.constant 0 : index
    %4 = vector.load %arg3[%c0_3, %c0_4] : memref<1x128xf32, #tpu.memory_space<vmem>>, vector<1x128xf32>
    %5 = vector.broadcast %4 : vector<1x128xf32> to vector<8x128xf32>
    %6 = arith.addf %3, %5 : vector<8x128xf32>
    %cst_5 = arith.constant 0.000000e+00 : f32
    %7 = vector.broadcast %cst_5 : f32 to vector<8x128xf32>
    %8 = arith.maximumf %6, %7 : vector<8x128xf32>
    %9 = arith.truncf %8 : vector<8x128xf32> to vector<8x128xbf16>
    %c0_6 = arith.constant 0 : index
    %c0_7 = arith.constant 0 : index
    %10 = vector.load %arg4[%c0_6, %c0_7] : memref<128x8xbf16, #tpu.memory_space<vmem>>, vector<128x8xbf16>
    %cst_8 = arith.constant dense<0.000000e+00> : vector<8x8xf32>
    %11 = tpu.matmul %9, %10, %cst_8 {dimension_numbers = #tpu.dot_dimension_numbers<[1], [0], [0], [1], [0, 0, 1, 1], [], []>} : vector<8x128xbf16>, vector<128x8xbf16>, vector<8x8xf32> -> vector<8x8xf32>
    %c0_9 = arith.constant 0 : index
    %c0_10 = arith.constant 0 : index
    %12 = vector.load %arg5[%c0_9, %c0_10] : memref<1x8xf32, #tpu.memory_space<vmem>>, vector<1x8xf32>
    %13 = vector.broadcast %12 : vector<1x8xf32> to vector<8x8xf32>
    %14 = arith.addf %11, %13 : vector<8x8xf32>
    %c0_11 = arith.constant 0 : index
    %c0_12 = arith.constant 0 : index
    %15 = vector.load %arg6[%c0_11, %c0_12] : memref<8x8xf32, #tpu.memory_space<vmem>>, vector<8x8xf32>
    tpu.vector_store %arg6[%c0_11, %c0_12], %14 {strides = array<i32>} : memref<8x8xf32, #tpu.memory_space<vmem>>, vector<8x8xf32>,
    %cst_13 = arith.constant dense<0xFF800000> : vector<8xf32>
    %16 = vector.multi_reduction <maximumf>, %14, %cst_13 [1] : vector<8x8xf32> to vector<8xf32>
    %17 = vector.shape_cast %16 : vector<8xf32> to vector<8x1xf32>
    %18 = vector.broadcast %17 : vector<8x1xf32> to vector<8x8xf32>
    %19 = arith.subf %14, %18 : vector<8x8xf32>
    %20 = math.exp %19 : vector<8x8xf32>
    %cst_14 = arith.constant dense<0.000000e+00> : vector<8xf32>
    %21 = vector.multi_reduction <add>, %20, %cst_14 [1] : vector<8x8xf32> to vector<8xf32>
    %22 = vector.shape_cast %21 : vector<8xf32> to vector<8x1xf32>
    %23 = vector.broadcast %22 : vector<8x1xf32> to vector<8x8xf32>
    %24 = arith.divf %20, %23 : vector<8x8xf32>
    %c0_15 = arith.constant 0 : index
    %c0_16 = arith.constant 0 : index
    %25 = vector.load %arg7[%c0_15, %c0_16] : memref<8x8xf32, #tpu.memory_space<vmem>>, vector<8x8xf32>
    tpu.vector_store %arg7[%c0_15, %c0_16], %24 {strides = array<i32>} : memref<8x8xf32, #tpu.memory_space<vmem>>, vector<8x8xf32>,
    return
  }
  func.func @transform_0(%arg0: i32) -> (i32, i32) {
    %c0_i32 = arith.constant 0 : i32
    %c0_i32_0 = arith.constant 0 : i32
    return %arg0, %c0_i32 : i32, i32
  }
  func.func @transform_1(%arg0: i32) -> (i32, i32) {
    %c0_i32 = arith.constant 0 : i32
    %c0_i32_0 = arith.constant 0 : i32
    %c0_i32_1 = arith.constant 0 : i32
    return %c0_i32, %c0_i32_0 : i32, i32
  }
  func.func @transform_2(%arg0: i32) -> (i32, i32) {
    %c0_i32 = arith.constant 0 : i32
    %c0_i32_0 = arith.constant 0 : i32
    %c0_i32_1 = arith.constant 0 : i32
    return %c0_i32, %c0_i32_0 : i32, i32
  }
  func.func @transform_3(%arg0: i32) -> (i32, i32) {
    %c0_i32 = arith.constant 0 : i32
    %c0_i32_0 = arith.constant 0 : i32
    %c0_i32_1 = arith.constant 0 : i32
    return %c0_i32, %c0_i32_0 : i32, i32
  }
  func.func @transform_4(%arg0: i32) -> (i32, i32) {
    %c0_i32 = arith.constant 0 : i32
    %c0_i32_0 = arith.constant 0 : i32
    %c0_i32_1 = arith.constant 0 : i32
    return %c0_i32, %c0_i32_0 : i32, i32
  }
  func.func @transform_5(%arg0: i32) -> (i32, i32) {
    %c0_i32 = arith.constant 0 : i32
    %c0_i32_0 = arith.constant 0 : i32
    return %arg0, %c0_i32 : i32, i32
  }
  func.func @transform_6(%arg0: i32) -> (i32, i32) {
    %c0_i32 = arith.constant 0 : i32
    %c0_i32_0 = arith.constant 0 : i32
    return %arg0, %c0_i32 : i32, i32
  }
}

</mosaic_0001>

<llo_original>
// kernel: tpu_custom_call.1
$region0: #{tpu_custom_call.1}
  #allocation0 [shape = 'u32[]', space=smem, size = 0x4, offset = 0x4, fixed_abs, tag = 'smem constant byte address 0x4 - core index']
  #allocation1 [shape = 'u32[72,128]{1,0:T(1,128)}', space=vmem, size = 0x9000, scoped, tag = 'internal scratch']
  %s0 = inlined_call_operand.vmem [shape: f32[8,32], index: 0, kind: input, shape index: {}]
  %s1 = inlined_call_operand.vmem [shape: bf16[32,128], index: 1, kind: input, shape index: {}]
  %s2 = inlined_call_operand.vmem [shape: f32[1,128], index: 2, kind: input, shape index: {}]
  %s3 = inlined_call_operand.vmem [shape: bf16[128,8], index: 3, kind: input, shape index: {}]
  %s4 = inlined_call_operand.vmem [shape: f32[1,8], index: 4, kind: input, shape index: {}]
  %s5 = inlined_call_operand.hbm [shape: f32[8,8], index: 5, kind: output, shape index: {0}]
  %s6 = inlined_call_operand.hbm [shape: f32[8,8], index: 6, kind: output, shape index: {1}]
  %7 = xla_tuple %s5, %s6
  %s8 = sld [smem:[#allocation0]]
  $region38: #{tpu_custom_call.1} parent=0
    _
  %s10 = ssub.s32 1, %s8
  %s11 = scalar_select 0, %s10, %s8
  $region1: #{tpu_custom_call.1} parent=0
    #allocation2 [shape = 'u8[4096]{0}', space=vmem, size = 0x1000, scoped, tag = 'output window, operand 0, single buffered']
    #allocation3 [shape = 's32[1]{0}', space=sflag, size = 0x4, scoped, tag = 'scoped memory for tpu_custom_call.1']
    #allocation4 [shape = 'u8[4096]{0}', space=vmem, size = 0x1000, scoped, tag = 'output window, operand 1, single buffered']
    #allocation5 [shape = 's32[1]{0}', space=sflag, size = 0x4, scoped, tag = 'scoped memory for tpu_custom_call.1']
    %12 = vsyncpa [#allocation3], 0
    %13 = vsyncpa [#allocation5], 0
    // Predicated region
    $region2: #{tpu_custom_call.1} parent=1 // pred_check
      _
    $region3: #{tpu_custom_call.1} parent=1 // pred_check_branch
      %15 = sbr.rel (0) target = $region5
    $region4: #{tpu_custom_call.1} parent=1 // pred_region
      _
    $region5: #{tpu_custom_call.1} parent=1 // pred_fallthru
      _
    // Predicated region
    $region6: #{tpu_custom_call.1} parent=1 // pred_check
      _
    $region7: #{tpu_custom_call.1} parent=1 // pred_check_branch
      %17 = sbr.rel (0) target = $region9
    $region8: #{tpu_custom_call.1} parent=1 // pred_region
      _
    $region9: #{tpu_custom_call.1} parent=1 // pred_fallthru
      _
    // Predicated region
    $region10: #{tpu_custom_call.1} parent=1 // pred_check
      _
    $region11: #{tpu_custom_call.1} parent=1 // pred_check_branch
      %19 = sbr.rel (0) target = $region13
    $region12: #{tpu_custom_call.1} parent=1 // pred_region
      _
    $region13: #{tpu_custom_call.1} parent=1 // pred_fallthru
      _
    // Predicated region
    $region14: #{tpu_custom_call.1} parent=1 // pred_check
      _
    $region15: #{tpu_custom_call.1} parent=1 // pred_check_branch
      %21 = sbr.rel (0) target = $region17
    $region16: #{tpu_custom_call.1} parent=1 // pred_region
      _
    $region17: #{tpu_custom_call.1} parent=1 // pred_fallthru
      _
    // Predicated region
    $region18: #{tpu_custom_call.1} parent=1 // pred_check
      _
    $region19: #{tpu_custom_call.1} parent=1 // pred_check_branch
      %23 = sbr.rel (0) target = $region21
    $region20: #{tpu_custom_call.1} parent=1 // pred_region
      _
    $region21: #{tpu_custom_call.1} parent=1 // pred_fallthru
      _
    %v25 = vld [vmem:[%s0] sm:$0xff]
    %v26 = vpack.c.bf16 %v25, %v25
    %v27 = vld [vmem:[%s1] sm:$0xf]
    %v28 = vld [vmem:[%s1 + $0x4] sm:$0xf]
    %v29 = vld [vmem:[%s1 + $0x8] sm:$0xf]
    %v30 = vld [vmem:[%s1 + $0xc] sm:$0xf]
    %v31 = vld [vmem:[%s2] sm:$0x1]
    %v33 = vperm.slane %v31, 0
    %v39 = vunpack.c.l.b16 %v27
    %v40 = vunpack.c.l.b16 %v28
    %v41 = vunpack.c.l.b16 %v29
    %v42 = vunpack.c.l.b16 %v30
    %v43 = vpack.c.b16 %v40, %v39
    %v44 = vpack.c.b16 %v42, %v41
    %vm47 = vcmask 261120
    %v49 = vsel %vm47, %v26, 0
    %51 = vmatpush.bf16.msra.mxu0 0
    %52 = vmatpush.bf16.msra.mxu0 0
    %53 = vmatpush.bf16.msra.mxu0 0
    %54 = vmatpush.bf16.msra.mxu0 0
    %55 = vmatpush.bf16.msra.mxu0 0
    %56 = vmatpush.bf16.msra.mxu0 0
    %57 = vmatpush.bf16.msra.mxu0 %v44
    %58 = vmatpush.bf16.msra.mxu0 %v43
    %59 = vmatmul.bf16.gmra.mxu0 %v49
    %v60 = vpop.f32.mrf.mxu0
    %v61 = vadd.f32 %v33, %v60
    %v62 = vpop.f32.mrf.mxu0
    %63 = vdwg.mxu0
    %v64 = vmax.f32 %v61, 0.0
    %v65 = vpack.c.bf16 %v64, %v64
    %v66 = vld [vmem:[%s3] sm:$0xf]
    %v67 = vld [vmem:[%s3 + $0x4] sm:$0xf]
    %v68 = vld [vmem:[%s3 + $0x8] sm:$0xf]
    %v69 = vld [vmem:[%s3 + $0xc] sm:$0xf]
    %v70 = vld [vmem:[%s3 + $0x10] sm:$0xf]
    %v71 = vld [vmem:[%s3 + $0x14] sm:$0xf]
    %v72 = vld [vmem:[%s3 + $0x18] sm:$0xf]
    %v73 = vld [vmem:[%s3 + $0x1c] sm:$0xf]
    %v74 = vld [vmem:[%s3 + $0x20] sm:$0xf]
    %v75 = vld [vmem:[%s3 + $0x24] sm:$0xf]
    %v76 = vld [vmem:[%s3 + $0x28] sm:$0xf]
    %v77 = vld [vmem:[%s3 + $0x2c] sm:$0xf]
    %v78 = vld [vmem:[%s3 + $0x30] sm:$0xf]
    %v79 = vld [vmem:[%s3 + $0x34] sm:$0xf]
    %v80 = vld [vmem:[%s3 + $0x38] sm:$0xf]
    %v81 = vld [vmem:[%s3 + $0x3c] sm:$0xf]
    %v82 = vld [vmem:[%s4] sm:$0x1]
    %v84 = vperm.slane %v82, 0
    %v102 = vunpack.c.l.b16 %v66
    %v103 = vunpack.c.l.b16 %v67
    %v104 = vunpack.c.l.b16 %v68
    %v105 = vunpack.c.l.b16 %v69
    %v106 = vunpack.c.l.b16 %v70
    %v107 = vunpack.c.l.b16 %v71
    %v108 = vunpack.c.l.b16 %v72
    %v109 = vunpack.c.l.b16 %v73
    %v110 = vunpack.c.l.b16 %v74
    %v111 = vunpack.c.l.b16 %v75
    %v112 = vunpack.c.l.b16 %v76
    %v113 = vunpack.c.l.b16 %v77
    %v114 = vunpack.c.l.b16 %v78
    %v115 = vunpack.c.l.b16 %v79
    %v116 = vunpack.c.l.b16 %v80
    %v117 = vunpack.c.l.b16 %v81
    %v118 = vpack.c.b16 %v103, %v102
    %v119 = vpack.c.b16 %v105, %v104
    %v120 = vpack.c.b16 %v107, %v106
    %v121 = vpack.c.b16 %v109, %v108
    %v122 = vpack.c.b16 %v111, %v110
    %v123 = vpack.c.b16 %v113, %v112
    %v124 = vpack.c.b16 %v115, %v114
    %v125 = vpack.c.b16 %v117, %v116
    %134 = vmatpush.bf16.msra.mxu0 %v125
    %135 = vmatpush.bf16.msra.mxu0 %v124
    %136 = vmatpush.bf16.msra.mxu0 %v123
    %137 = vmatpush.bf16.msra.mxu0 %v122
    %138 = vmatpush.bf16.msra.mxu0 %v121
    %139 = vmatpush.bf16.msra.mxu0 %v120
    %140 = vmatpush.bf16.msra.mxu0 %v119
    %141 = vmatpush.bf16.msra.mxu0 %v118
    %142 = vmatmul.bf16.gmra.mxu0 %v65
    %v143 = vpop.f32.mrf.mxu0
    %v144 = vadd.f32 %v84, %v143
    %v145 = vpop.f32.mrf.mxu0
    %146 = vdwg.mxu0
    %vm147 = vcmask 64512
    %148 = vst.msk [vmem:[#allocation2] sm:$0xff] %vm147, %v144
    %v149 = vsel %vm147, %v144, -inf
    %150 = vmax.xlane.f32.xlu0 %v149
    %v151 = vpop.xlane.xlu0 %150
    %v152 = vsub.f32 %v144, %v151
    %v153 = vmul.f32 %v152, 1.442695
    %v154 = vpow.pop %v153
    %v155 = vsel %vm147, %v154, 0.0
    %156 = vadd.xlane.f32.xlu0 %v155
    %v157 = vpop.xlane.xlu0 %156
    %v158 = vrcp.pop %v157
    %v159 = vmul.f32 %v157, %v158
    %v160 = vsub.f32 1.0, %v159
    %v161 = vmul.f32 %v158, %v160
    %v162 = vadd.f32 %v158, %v161
    %vm163 = vweird.f32 %v157
    %vm164 = vweird.f32 %v158
    %vm165 = vmor %vm163, %vm164
    %v166 = vsel %vm165, %v158, %v162
    %v167 = vand.u32 2147483647, %v157
    %vm168 = vcmp.eq.f32.partialorder %v167, 8.507059e+37
    %v169 = vand.u32 %v157, 2147483648
    %v170 = vor.u32 1.1754944e-38, %v169
    %v171 = vsel %vm168, %v170, %v166
    %v172 = vmul.f32 %v154, %v171
    %173 = vst.msk [vmem:[#allocation4] sm:$0xff] %vm147, %v172
    // Predicated region
    $region22: #{tpu_custom_call.1} parent=1 // pred_check
      _
    $region23: #{tpu_custom_call.1} parent=1 // pred_check_branch
      %175 = sbr.rel (0) target = $region25
    $region24: #{tpu_custom_call.1} parent=1 // pred_region
      %177 = vsyncadd [#allocation3], 0
      %s179 = sshll.u32 [#allocation2], 4
      %s180 = int_to_ptr.vmem [resolvable:$true] %s179
      %s181 = sshll.u32 %s5, 4
      %s182 = int_to_ptr.hbm [resolvable:$true] %s181
      %184 = dma.vmem_to_hbm [thread:$0]  %s180, 128, %s182, [#allocation3]
    $region25: #{tpu_custom_call.1} parent=1 // pred_fallthru
      _
    // Predicated region
    $region26: #{tpu_custom_call.1} parent=1 // pred_check
      _
    $region27: #{tpu_custom_call.1} parent=1 // pred_check_branch
      %186 = sbr.rel (0) target = $region29
    $region28: #{tpu_custom_call.1} parent=1 // pred_region
      %188 = vsyncadd [#allocation5], 0
      %s190 = sshll.u32 [#allocation4], 4
      %s191 = int_to_ptr.vmem [resolvable:$true] %s190
      %s192 = sshll.u32 %s6, 4
      %s193 = int_to_ptr.hbm [resolvable:$true] %s192
      %195 = dma.vmem_to_hbm [thread:$0]  %s191, 128, %s193, [#allocation5]
    $region29: #{tpu_custom_call.1} parent=1 // pred_fallthru
      _
    // Predicated region
    $region30: #{tpu_custom_call.1} parent=1 // pred_check
      _
    $region31: #{tpu_custom_call.1} parent=1 // pred_check_branch
      %197 = sbr.rel (0) target = $region33
    $region32: #{tpu_custom_call.1} parent=1 // pred_region
      %199 = dma.done [#allocation3], 128
    $region33: #{tpu_custom_call.1} parent=1 // pred_fallthru
      _
    // Predicated region
    $region34: #{tpu_custom_call.1} parent=1 // pred_check
      _
    $region35: #{tpu_custom_call.1} parent=1 // pred_check_branch
      %201 = sbr.rel (0) target = $region37
    $region36: #{tpu_custom_call.1} parent=1 // pred_region
      %203 = dma.done [#allocation5], 128
    $region37: #{tpu_custom_call.1} parent=1 // pred_fallthru
      _
    %204 = vsyncpa [#allocation3], 1
    %205 = vsyncpa [#allocation5], 1

// kernel: tpu_custom_call.1
$region0: #{tpu_custom_call.1}
  #allocation0 [shape = 'u32[]', space=smem, size = 0x4, offset = 0x4, fixed_abs, tag = 'smem constant byte address 0x4 - core index']
  #allocation1 [shape = 'u32[72,128]{1,0:T(1,128)}', space=vmem, size = 0x9000, scoped, tag = 'internal scratch']
  %s0 = inlined_call_operand.vmem [shape: f32[8,32], index: 0, kind: input, shape index: {}]
  %s1 = inlined_call_operand.vmem [shape: bf16[32,128], index: 1, kind: input, shape index: {}]
  %s2 = inlined_call_operand.vmem [shape: f32[1,128], index: 2, kind: input, shape index: {}]
  %s3 = inlined_call_operand.vmem [shape: bf16[128,8], index: 3, kind: input, shape index: {}]
  %s4 = inlined_call_operand.vmem [shape: f32[1,8], index: 4, kind: input, shape index: {}]
  %s5 = inlined_call_operand.hbm [shape: f32[8,8], index: 5, kind: output, shape index: {0}]
  %s6 = inlined_call_operand.hbm [shape: f32[8,8], index: 6, kind: output, shape index: {1}]
  %7 = xla_tuple %s5, %s6
  %s8 = sld [smem:[#allocation0]]
  $region38: #{tpu_custom_call.1} parent=0
    _
  %s10 = ssub.s32 1, %s8
  %s11 = scalar_select 0, %s10, %s8
  $region1: #{tpu_custom_call.1} parent=0
    #allocation2 [shape = 'u8[4096]{0}', space=vmem, size = 0x1000, scoped, tag = 'output window, operand 0, single buffered']
    #allocation3 [shape = 's32[1]{0}', space=sflag, size = 0x4, scoped, tag = 'scoped memory for tpu_custom_call.1']
    #allocation4 [shape = 'u8[4096]{0}', space=vmem, size = 0x1000, scoped, tag = 'output window, operand 1, single buffered']
    #allocation5 [shape = 's32[1]{0}', space=sflag, size = 0x4, scoped, tag = 'scoped memory for tpu_custom_call.1']
    %12 = vsyncpa [#allocation3], 0
    %13 = vsyncpa [#allocation5], 0
    // Predicated region
    $region2: #{tpu_custom_call.1} parent=1 // pred_check
      _
    $region3: #{tpu_custom_call.1} parent=1 // pred_check_branch
      %15 = sbr.rel (0) target = $region5
    $region4: #{tpu_custom_call.1} parent=1 // pred_region
      _
    $region5: #{tpu_custom_call.1} parent=1 // pred_fallthru
      _
    // Predicated region
    $region6: #{tpu_custom_call.1} parent=1 // pred_check
      _
    $region7: #{tpu_custom_call.1} parent=1 // pred_check_branch
      %17 = sbr.rel (0) target = $region9
    $region8: #{tpu_custom_call.1} parent=1 // pred_region
      _
    $region9: #{tpu_custom_call.1} parent=1 // pred_fallthru
      _
    // Predicated region
    $region10: #{tpu_custom_call.1} parent=1 // pred_check
      _
    $region11: #{tpu_custom_call.1} parent=1 // pred_check_branch
      %19 = sbr.rel (0) target = $region13
    $region12: #{tpu_custom_call.1} parent=1 // pred_region
      _
    $region13: #{tpu_custom_call.1} parent=1 // pred_fallthru
      _
    // Predicated region
    $region14: #{tpu_custom_call.1} parent=1 // pred_check
      _
    $region15: #{tpu_custom_call.1} parent=1 // pred_check_branch
      %21 = sbr.rel (0) target = $region17
    $region16: #{tpu_custom_call.1} parent=1 // pred_region
      _
    $region17: #{tpu_custom_call.1} parent=1 // pred_fallthru
      _
    // Predicated region
    $region18: #{tpu_custom_call.1} parent=1 // pred_check
      _
    $region19: #{tpu_custom_call.1} parent=1 // pred_check_branch
      %23 = sbr.rel (0) target = $region21
    $region20: #{tpu_custom_call.1} parent=1 // pred_region
      _
    $region21: #{tpu_custom_call.1} parent=1 // pred_fallthru
      _
    %v25 = vld [vmem:[%s0] sm:$0xff]
    %v26 = vpack.c.bf16 %v25, %v25
    %v27 = vld [vmem:[%s1] sm:$0xf]
    %v28 = vld [vmem:[%s1 + $0x4] sm:$0xf]
    %v29 = vld [vmem:[%s1 + $0x8] sm:$0xf]
    %v30 = vld [vmem:[%s1 + $0xc] sm:$0xf]
    %v31 = vld [vmem:[%s2] sm:$0x1]
    %v33 = vperm.slane %v31, 0
    %v39 = vunpack.c.l.b16 %v27
    %v40 = vunpack.c.l.b16 %v28
    %v41 = vunpack.c.l.b16 %v29
    %v42 = vunpack.c.l.b16 %v30
    %v43 = vpack.c.b16 %v40, %v39
    %v44 = vpack.c.b16 %v42, %v41
    %vm47 = vcmask 261120
    %v49 = vsel %vm47, %v26, 0
    %51 = vmatpush.bf16.msra.mxu0 0
    %52 = vmatpush.bf16.msra.mxu0 0
    %53 = vmatpush.bf16.msra.mxu0 0
    %54 = vmatpush.bf16.msra.mxu0 0
    %55 = vmatpush.bf16.msra.mxu0 0
    %56 = vmatpush.bf16.msra.mxu0 0
    %57 = vmatpush.bf16.msra.mxu0 %v44
    %58 = vmatpush.bf16.msra.mxu0 %v43
    %59 = vmatmul.bf16.gmra.mxu0 %v49
    %v60 = vpop.f32.mrf.mxu0
    %v61 = vadd.f32 %v33, %v60
    %v62 = vpop.f32.mrf.mxu0
    %63 = vdwg.mxu0
    %v64 = vmax.f32 %v61, 0.0
    %v65 = vpack.c.bf16 %v64, %v64
    %v66 = vld [vmem:[%s3] sm:$0xf]
    %v67 = vld [vmem:[%s3 + $0x4] sm:$0xf]
    %v68 = vld [vmem:[%s3 + $0x8] sm:$0xf]
    %v69 = vld [vmem:[%s3 + $0xc] sm:$0xf]
    %v70 = vld [vmem:[%s3 + $0x10] sm:$0xf]
    %v71 = vld [vmem:[%s3 + $0x14] sm:$0xf]
    %v72 = vld [vmem:[%s3 + $0x18] sm:$0xf]
    %v73 = vld [vmem:[%s3 + $0x1c] sm:$0xf]
    %v74 = vld [vmem:[%s3 + $0x20] sm:$0xf]
    %v75 = vld [vmem:[%s3 + $0x24] sm:$0xf]
    %v76 = vld [vmem:[%s3 + $0x28] sm:$0xf]
    %v77 = vld [vmem:[%s3 + $0x2c] sm:$0xf]
    %v78 = vld [vmem:[%s3 + $0x30] sm:$0xf]
    %v79 = vld [vmem:[%s3 + $0x34] sm:$0xf]
    %v80 = vld [vmem:[%s3 + $0x38] sm:$0xf]
    %v81 = vld [vmem:[%s3 + $0x3c] sm:$0xf]
    %v82 = vld [vmem:[%s4] sm:$0x1]
    %v84 = vperm.slane %v82, 0
    %v102 = vunpack.c.l.b16 %v66
    %v103 = vunpack.c.l.b16 %v67
    %v104 = vunpack.c.l.b16 %v68
    %v105 = vunpack.c.l.b16 %v69
    %v106 = vunpack.c.l.b16 %v70
    %v107 = vunpack.c.l.b16 %v71
    %v108 = vunpack.c.l.b16 %v72
    %v109 = vunpack.c.l.b16 %v73
    %v110 = vunpack.c.l.b16 %v74
    %v111 = vunpack.c.l.b16 %v75
    %v112 = vunpack.c.l.b16 %v76
    %v113 = vunpack.c.l.b16 %v77
    %v114 = vunpack.c.l.b16 %v78
    %v115 = vunpack.c.l.b16 %v79
    %v116 = vunpack.c.l.b16 %v80
    %v117 = vunpack.c.l.b16 %v81
    %v118 = vpack.c.b16 %v103, %v102
    %v119 = vpack.c.b16 %v105, %v104
    %v120 = vpack.c.b16 %v107, %v106
    %v121 = vpack.c.b16 %v109, %v108
    %v122 = vpack.c.b16 %v111, %v110
    %v123 = vpack.c.b16 %v113, %v112
    %v124 = vpack.c.b16 %v115, %v114
    %v125 = vpack.c.b16 %v117, %v116
    %134 = vmatpush.bf16.msra.mxu0 %v125
    %135 = vmatpush.bf16.msra.mxu0 %v124
    %136 = vmatpush.bf16.msra.mxu0 %v123
    %137 = vmatpush.bf16.msra.mxu0 %v122
    %138 = vmatpush.bf16.msra.mxu0 %v121
    %139 = vmatpush.bf16.msra.mxu0 %v120
    %140 = vmatpush.bf16.msra.mxu0 %v119
    %141 = vmatpush.bf16.msra.mxu0 %v118
    %142 = vmatmul.bf16.gmra.mxu0 %v65
    %v143 = vpop.f32.mrf.mxu0
    %v144 = vadd.f32 %v84, %v143
    %v145 = vpop.f32.mrf.mxu0
    %146 = vdwg.mxu0
    %vm147 = vcmask 64512
    %148 = vst.msk [vmem:[#allocation2] sm:$0xff] %vm147, %v144
    %v149 = vsel %vm147, %v144, -inf
    %150 = vmax.xlane.f32.xlu0 %v149
    %v151 = vpop.xlane.xlu0 %150
    %v152 = vsub.f32 %v144, %v151
    %v153 = vmul.f32 %v152, 1.442695
    %v154 = vpow.pop %v153
    %v155 = vsel %vm147, %v154, 0.0
    %156 = vadd.xlane.f32.xlu0 %v155
    %v157 = vpop.xlane.xlu0 %156
    %v158 = vrcp.pop %v157
    %v159 = vmul.f32 %v157, %v158
    %v160 = vsub.f32 1.0, %v159
    %v161 = vmul.f32 %v158, %v160
    %v162 = vadd.f32 %v158, %v161
    %vm163 = vweird.f32 %v157
    %vm164 = vweird.f32 %v158
    %vm165 = vmor %vm163, %vm164
    %v166 = vsel %vm165, %v158, %v162
    %v167 = vand.u32 2147483647, %v157
    %vm168 = vcmp.eq.f32.partialorder %v167, 8.507059e+37
    %v169 = vand.u32 %v157, 2147483648
    %v170 = vor.u32 1.1754944e-38, %v169
    %v171 = vsel %vm168, %v170, %v166
    %v172 = vmul.f32 %v154, %v171
    %173 = vst.msk [vmem:[#allocation4] sm:$0xff] %vm147, %v172
    // Predicated region
    $region22: #{tpu_custom_call.1} parent=1 // pred_check
      _
    $region23: #{tpu_custom_call.1} parent=1 // pred_check_branch
      %175 = sbr.rel (0) target = $region25
    $region24: #{tpu_custom_call.1} parent=1 // pred_region
      %177 = vsyncadd [#allocation3], 0
      %s179 = sshll.u32 [#allocation2], 4
      %s180 = int_to_ptr.vmem [resolvable:$true] %s179
      %s181 = sshll.u32 %s5, 4
      %s182 = int_to_ptr.hbm [resolvable:$true] %s181
      %184 = dma.vmem_to_hbm [thread:$0]  %s180, 128, %s182, [#allocation3]
    $region25: #{tpu_custom_call.1} parent=1 // pred_fallthru
      _
    // Predicated region
    $region26: #{tpu_custom_call.1} parent=1 // pred_check
      _
    $region27: #{tpu_custom_call.1} parent=1 // pred_check_branch
      %186 = sbr.rel (0) target = $region29
    $region28: #{tpu_custom_call.1} parent=1 // pred_region
      %188 = vsyncadd [#allocation5], 0
      %s190 = sshll.u32 [#allocation4], 4
      %s191 = int_to_ptr.vmem [resolvable:$true] %s190
      %s192 = sshll.u32 %s6, 4
      %s193 = int_to_ptr.hbm [resolvable:$true] %s192
      %195 = dma.vmem_to_hbm [thread:$0]  %s191, 128, %s193, [#allocation5]
    $region29: #{tpu_custom_call.1} parent=1 // pred_fallthru
      _
    // Predicated region
    $region30: #{tpu_custom_call.1} parent=1 // pred_check
      _
    $region31: #{tpu_custom_call.1} parent=1 // pred_check_branch
      %197 = sbr.rel (0) target = $region33
    $region32: #{tpu_custom_call.1} parent=1 // pred_region
      %199 = dma.done [#allocation3], 128
    $region33: #{tpu_custom_call.1} parent=1 // pred_fallthru
      _
    // Predicated region
    $region34: #{tpu_custom_call.1} parent=1 // pred_check
      _
    $region35: #{tpu_custom_call.1} parent=1 // pred_check_branch
      %201 = sbr.rel (0) target = $region37
    $region36: #{tpu_custom_call.1} parent=1 // pred_region
      %203 = dma.done [#allocation5], 128
    $region37: #{tpu_custom_call.1} parent=1 // pred_fallthru
      _
    %204 = vsyncpa [#allocation3], 1
    %205 = vsyncpa [#allocation5], 1

</llo_original>
